<compile_context>
chip_gen: v7x
topology: tpu7x:2x2x1
jax: 0.10.0
libtpu: 0.0.40
codegen_flags: <defaults>
</compile_context>

<pallas_src>
import functools

import jax
import jax.numpy as jnp
from jax.experimental import pallas as pl
from jax.experimental.pallas import tpu as pltpu


_SUBLANE_MULT = {4: 8, 2: 16, 1: 32}     # f32 -> 8, bf16/f16 -> 16, int8/fp8 -> 32
_SMALL_FAST_PATH_BYTES = 256 * 1024      # below this a metadata-only reshape wins


def _device_block_config():
    """Per-generation (block_bytes, vmem_limit_bytes, is_v7x)."""
    try:
        kind = jax.devices()[0].device_kind.lower()
    except Exception:  # pragma: no cover - defensive, e.g. no devices visible
        kind = ""
    if "v7" in kind:
        # 3.2 TB/s HBM needs big blocks; 8 MiB x (2 in + 2 out) double buffers
        # = 32 MiB, so raise the scoped VMEM limit (64 MiB physical on v7x).
        return 8 * 1024 * 1024, 48 * 1024 * 1024, True
    if "v6" in kind:
        # 2-4 MiB is the measured sweet spot; fits the 32 MiB scoped default.
        return 4 * 1024 * 1024, None, False
    # v5e and anything unknown: 2 MiB stays well under the 16 MiB scoped default.
    return 2 * 1024 * 1024, None, False


def _copy_kernel(x_ref, o_ref):
    # Identity copy of the current (block_rows, lanes) tile.
    o_ref[...] = x_ref[...]


def _resolve_shape(shape, total):
    """Resolve a possible -1 (torch .view allows one) and validate."""
    shape = tuple(int(s) for s in shape)
    if -1 in shape:
        assert shape.count(-1) == 1, f"only one -1 allowed in view shape {shape}"
        known = 1
        for s in shape:
            if s != -1:
                known *= s
        assert known != 0 and total % known == 0, (
            f"view shape {shape} invalid for input of size {total}")
        shape = tuple(total // known if s == -1 else s for s in shape)
    prod = 1
    for s in shape:
        prod *= s
    assert prod == total, f"view shape {shape} invalid for input of size {total}"
    return shape


def pallas_view(x, shape, *, force_kernel=False):
    """Reproduce torch.Tensor.view(shape) semantics (row-major reshape)."""
    total = x.size
    shape = _resolve_shape(shape, total)
    itemsize = jnp.dtype(x.dtype).itemsize

    # ---- fast paths -------------------------------------------------------
    # A view on contiguous data fundamentally needs no data movement.  When
    # the explicit copy cannot be expressed as full lane-dense tiles (length
    # not a multiple of 128, unsupported element size) or the tensor is too
    # small to amortize a kernel launch, the metadata-only reshape is both
    # exact and strictly faster (zero extra HBM traffic).
    unsupported = (itemsize not in _SUBLANE_MULT) or (total % 128 != 0) or total == 0
    too_small = total * itemsize < _SMALL_FAST_PATH_BYTES
    if unsupported or (too_small and not force_kernel):
        return jnp.reshape(x, shape)

    # ---- lane-dense 2D factorization (no padding, no tail slice) ----------
    mult = _SUBLANE_MULT[itemsize]
    lanes = next(l for l in (512, 256, 128) if total % l == 0)
    rows = total // lanes

    block_bytes, vmem_limit, is_v7x = _device_block_config()
    block_rows = max(mult, block_bytes // (lanes * itemsize))
    if block_rows >= rows:
        block_rows = rows                       # single full-extent block
    else:
        block_rows -= block_rows % mult         # keep sublane-packed alignment
        if rows % block_rows != 0:
            # Prefer an exact divisor of `rows` so no grid block is partial
            # (avoids masked vst.msk stores on the last block).
            for cand in range(block_rows, mult - 1, -mult):
                if rows % cand == 0:
                    block_rows = cand
                    break
    num_blocks = pl.cdiv(rows, block_rows)

    # Only CORE_PARALLEL actually shards a grid axis across v7x's two
    # TensorCores; "parallel" vs "arbitrary" is a measured no-op elsewhere.
    if is_v7x and num_blocks >= 2:
        semantics = (pltpu.CORE_PARALLEL,)
    else:
        semantics = ("arbitrary",)

    x2d = jnp.reshape(x, (rows, lanes))         # metadata-only on contiguous input

    out2d = pl.pallas_call(
        _copy_kernel,
        out_shape=jax.ShapeDtypeStruct((rows, lanes), x.dtype),
        grid=(num_blocks,),
        in_specs=[pl.BlockSpec((block_rows, lanes), lambda i: (i, 0))],
        out_specs=pl.BlockSpec((block_rows, lanes), lambda i: (i, 0)),
        compiler_params=pltpu.CompilerParams(
            dimension_semantics=semantics,
            vmem_limit_bytes=vmem_limit,
        ),
        cost_estimate=pl.CostEstimate(
            flops=0,
            transcendentals=0,
            bytes_accessed=2 * total * itemsize,
        ),
    )(x2d)

    # Metadata-only reshape to the requested view shape (matches torch .view).
    return jnp.reshape(out2d, shape)


if __name__ == "__main__":
    key = jax.random.PRNGKey(0)
    # Small NCHW input, consistent with typical use of View before an FC layer.
    x = jax.random.normal(key, (2, 4, 16, 16), dtype=jnp.float32)
    target_shape = (2, -1)

    # Force the Pallas copy kernel so it is exercised even at this tiny size.
    view_kernel = jax.jit(
        functools.partial(pallas_view, shape=target_shape, force_kernel=True))
    y = jax.block_until_ready(view_kernel(x))

    # Default path: small tensor -> metadata-only reshape fast path.
    view_fast = jax.jit(functools.partial(pallas_view, shape=target_shape))
    y_fast = jax.block_until_ready(view_fast(x))

    # Correctness check against plain reshape (torch .view on contiguous data).
    y_ref = jnp.reshape(x, (2, 4 * 16 * 16))
    assert y.shape == (2, 1024), y.shape
    assert y.dtype == x.dtype
    assert bool(jnp.array_equal(y, y_ref))
    assert bool(jnp.array_equal(y_fast, y_ref))

    print("KERNEL_OK")
</pallas_src>

<mosaic_0001>
module attributes {stable_mosaic.version = 11 : i64} {
  func.func @_copy_kernel(%arg0: i32, %arg1: memref<4x512xf32, #tpu.memory_space<vmem>>, %arg2: memref<4x512xf32, #tpu.memory_space<vmem>>) attributes {dimension_semantics = [#tpu.dimension_semantics<arbitrary>], iteration_bounds = array<i64: 1>, scalar_prefetch = 0 : i64, scratch_operands = 0 : i64, tpu.core_type = #tpu.core_type<tc>, window_params = [{transform_indices = @transform_0, window_bounds = array<i64: 4, 512>}, {transform_indices = @transform_1, window_bounds = array<i64: 4, 512>}]} {
    %c0 = arith.constant 0 : index
    %c0_0 = arith.constant 0 : index
    %0 = vector.load %arg1[%c0, %c0_0] : memref<4x512xf32, #tpu.memory_space<vmem>>, vector<4x512xf32>
    %c0_1 = arith.constant 0 : index
    %c0_2 = arith.constant 0 : index
    %1 = vector.load %arg2[%c0_1, %c0_2] : memref<4x512xf32, #tpu.memory_space<vmem>>, vector<4x512xf32>
    tpu.vector_store %arg2[%c0_1, %c0_2], %0 {strides = array<i32>} : memref<4x512xf32, #tpu.memory_space<vmem>>, vector<4x512xf32>,
    return
  }
  func.func @transform_0(%arg0: i32) -> (i32, i32) {
    %c0_i32 = arith.constant 0 : i32
    %c0_i32_0 = arith.constant 0 : i32
    return %arg0, %c0_i32 : i32, i32
  }
  func.func @transform_1(%arg0: i32) -> (i32, i32) {
    %c0_i32 = arith.constant 0 : i32
    %c0_i32_0 = arith.constant 0 : i32
    return %arg0, %c0_i32 : i32, i32
  }
}

</mosaic_0001>

<llo_original>
// kernel: pallas_view.1
$region0: #{pallas_view.1}
  #allocation0 [shape = 'u32[]', space=smem, size = 0x4, offset = 0x4, fixed_abs, tag = 'smem constant byte address 0x4 - core index']
  #allocation1 [shape = 'u32[144,128]{1,0:T(1,128)}', space=vmem, size = 0x12000, scoped, tag = 'internal scratch']
  %s0 = inlined_call_operand.vmem [shape: f32[4,512], index: 0, kind: input, shape index: {}]
  %s1 = inlined_call_operand.vmem [shape: f32[4,512], index: 1, kind: output, shape index: {}]
  %s2 = sld [smem:[#allocation0]]
  $region14: #{pallas_view.1} parent=0
    _
  %s4 = ssub.s32 1, %s2
  %s5 = scalar_select 0, %s4, %s2
  // Predicated region
  $region2: #{pallas_view.1} parent=0 // pred_check
    _
  $region3: #{pallas_view.1} parent=0 // pred_check_branch
    %7 = sbr.rel (0) target = $region5
  $region4: #{pallas_view.1} parent=0 // pred_region
    _
  $region5: #{pallas_view.1} parent=0 // pred_fallthru
    _
  %v8 = vld [vmem:[%s0] sm:$0xff]
  %v9 = vld [vmem:[%s0 + $0x8] sm:$0xff]
  %10 = vst [vmem:[%s1] sm:$0xff] %v8
  %11 = vst [vmem:[%s1 + $0x8] sm:$0xff] %v9
  // Predicated region
  $region6: #{pallas_view.1} parent=0 // pred_check
    _
  $region7: #{pallas_view.1} parent=0 // pred_check_branch
    %13 = sbr.rel (0) target = $region9
  $region8: #{pallas_view.1} parent=0 // pred_region
    _
  $region9: #{pallas_view.1} parent=0 // pred_fallthru
    _
  // Predicated region
  $region10: #{pallas_view.1} parent=0 // pred_check
    _
  $region11: #{pallas_view.1} parent=0 // pred_check_branch
    %15 = sbr.rel (0) target = $region13
  $region12: #{pallas_view.1} parent=0 // pred_region
    _
  $region13: #{pallas_view.1} parent=0 // pred_fallthru
    _

</llo_original>
